<compile_context>
chip_gen: v7x
topology: tpu7x:2x2x1
jax: 0.10.0
libtpu: 0.0.40
codegen_flags: <defaults>
</compile_context>

<pallas_src>
import jax
import jax.numpy as jnp
import numpy as np
from jax.experimental import pallas as pl
from jax.experimental.pallas import tpu as pltpu

EPS = np.float32(1e-6)
SQRT_EPS = np.float32(np.sqrt(np.float32(1e-6)))


def make_kernel(IN, L, R1):
    def layer_kernel(xv_ref, p_ref, mz_ref, r_ref):
        xv = xv_ref[...]                        # (B, IN+1+L) = [x | 1 | v]
        p = p_ref[...]                          # (R1+3L+1, 3L) parameter slab

        xa = xv[:, :IN + 1]                     # (B, IN+1)  (ones column folded in)
        v = xv[:, IN + 1:IN + 1 + L]            # (B, L)
        w1a = p[:IN + 1, :]                     # (IN+1, 3L) layer-1 weight + bias row
        w2 = p[R1:R1 + 3 * L, :]                # (3L, 3L)   block-diagonal layer-2 weight
        b2 = p[R1 + 3 * L:R1 + 3 * L + 1, :]    # (1, 3L)    layer-2 bias row

        B = xa.shape[0]
        lane = jax.lax.broadcasted_iota(jnp.int32, (B, 3 * L), 1)
        mean_lane = lane >= 2 * L               # tanh-branch lanes [2L, 3L)

        # ---- layer 1: one MXU op; mean columns pre-scaled by 2 wrapper-side so
        #      tanh(h) = 2*sigmoid(2h) - 1 costs a single EUP sigmoid pass ----
        h1 = jnp.dot(xa, w1a, preferred_element_type=jnp.float32)
        s1 = jax.nn.sigmoid(h1)
        a1 = jnp.where(mean_lane, 2.0 * s1 - 1.0, s1)          # (B, 3L)

        # ---- layer 2: one block-diagonal MXU op, same activation trick ----
        h2 = jnp.dot(a1, w2, preferred_element_type=jnp.float32) + b2
        s2 = jax.nn.sigmoid(h2)
        a2 = jnp.where(mean_lane, 2.0 * s2 - 1.0, s2)          # (B, 3L)

        d = a2[:, :L]
        u = a2[:, L:2 * L]
        mean = a2[:, 2 * L:3 * L]

        # ---- calculate_r via rank-one algebra (no batched einsums) ----
        # D_inv    = diag(1/d) + eps on EVERY entry (faithful to torch)
        # D_in_sqr = sqrt(D_inv): sqrt(eps) off-diag, sqrt(1/d + eps) on the diag
        d_recip = 1.0 / d                                      # (B, L)
        sdiag = jnp.sqrt(d_recip + EPS)                        # (B, L)
        su = jnp.sum(u, axis=-1, keepdims=True)                # (B, 1)
        dinv_u = u * d_recip + EPS * su                        # (B, L) = D_inv @ u
        dsqrt_u = sdiag * u + SQRT_EPS * (su - u)              # (B, L) = D_in_sqr @ u

        s = jnp.sum(u * dinv_u, axis=-1, keepdims=True)        # (B, 1) = u^T D_inv u
        sqrt_eta = jax.lax.rsqrt(1.0 + s)                      # (B, 1)
        # stable form of (1 - sqrt_eta)/s  ==  1/((1+s) + sqrt(1+s))
        right = (sqrt_eta * sqrt_eta) / (1.0 + sqrt_eta)       # (B, 1)

        row = jax.lax.broadcasted_iota(jnp.int32, (L, L), 0)
        col = jax.lax.broadcasted_iota(jnp.int32, (L, L), 1)
        diag = (row == col)[None, :, :]                        # (1, L, L)
        d_in_sqr = jnp.where(diag, sdiag[:, :, None], SQRT_EPS)
        # R = D_in_sqr - right * (D_inv u)(D_in_sqr u)^T
        R = d_in_sqr - (right[:, :, None] * dinv_u[:, :, None]) * dsqrt_u[:, None, :]

        # ---- calculate_z: z = R @ v + mean via the same rank-one structure ----
        sv = jnp.sum(v, axis=-1, keepdims=True)
        duv = jnp.sum(dsqrt_u * v, axis=-1, keepdims=True)
        z = sdiag * v + SQRT_EPS * (sv - v) - (right * duv) * dinv_u + mean

        mz_ref[...] = jnp.concatenate([mean, z], axis=1)       # coalesced output
        r_ref[...] = R

    return layer_kernel


def pack_params(params, R1):
    """Pack the 12 Linear weights/biases into ONE (R1+3L+1, 3L) f32 slab."""
    IN = params['wd1'].shape[0]
    L = params['wd2'].shape[1]
    f32 = jnp.float32

    # layer 1 fused weight (IN,3L) + bias row; mean columns pre-scaled by 2
    w1 = jnp.concatenate([params['wd1'], params['wu1'], 2.0 * params['wm1']], axis=1)
    b1 = jnp.concatenate([params['bd1'], params['bu1'], 2.0 * params['bm1']], axis=1)
    blk1 = jnp.concatenate([w1, b1], axis=0).astype(f32)                 # (IN+1, 3L)
    pad = jnp.zeros((R1 - (IN + 1), 3 * L), f32)                         # sublane-align W2

    # layer 2 block-diagonal weight (3L,3L); mean block pre-scaled by 2
    zero = jnp.zeros((L, L), f32)
    w2 = jnp.concatenate([
        jnp.concatenate([params['wd2'], zero, zero], axis=1),
        jnp.concatenate([zero, params['wu2'], zero], axis=1),
        jnp.concatenate([zero, zero, 2.0 * params['wm2']], axis=1),
    ], axis=0).astype(f32)                                               # (3L, 3L)
    b2 = jnp.concatenate([params['bd2'], params['bu2'], 2.0 * params['bm2']],
                         axis=1).astype(f32)                             # (1, 3L)

    return jnp.concatenate([blk1, pad, w2, b2], axis=0)                  # (R1+3L+1, 3L)


def layer_forward(x, v, params):
    B, IN = x.shape
    L = params['wd2'].shape[1]
    R1 = ((IN + 1 + 7) // 8) * 8      # sublane-aligned row offset of the W2 block

    xv = jnp.concatenate([x, jnp.ones((B, 1), jnp.float32), v], axis=1)  # (B, IN+1+L)
    slab = pack_params(params, R1)

    vmem = lambda: pl.BlockSpec(memory_space=pltpu.MemorySpace.VMEM)
    out_shape = (jax.ShapeDtypeStruct((B, 2 * L), jnp.float32),
                 jax.ShapeDtypeStruct((B, L, L), jnp.float32))
    # TODO(synk): for large B, add grid=(pl.cdiv(B, TB),) with
    # dimension_semantics=("parallel",) (uses both v7x TensorCores) and size TB so
    # the (TB, L, L) R block plus double-buffered tiles stays under v7x's 64 MiB
    # VMEM; also batch many Layer invocations per pallas_call on v6e so the MXU
    # sees >=(128,K)x(K,128) operands.
    mz, R = pl.pallas_call(
        make_kernel(IN, L, R1),
        out_shape=out_shape,
        in_specs=[vmem(), vmem()],
        out_specs=(vmem(), vmem()),
    )(xv, slab)
    return mz[:, :L], R, mz[:, L:]


def layer_ref(x, v, p):
    """Pure-JAX reference mirroring the PyTorch module exactly."""
    def mlp(x, w1, b1, w2, b2, act):
        h = act(x @ w1 + b1)
        return act(h @ w2 + b2)
    d = mlp(x, p['wd1'], p['bd1'], p['wd2'], p['bd2'], jax.nn.sigmoid)
    u = mlp(x, p['wu1'], p['bu1'], p['wu2'], p['bu2'], jax.nn.sigmoid)
    mean = mlp(x, p['wm1'], p['bm1'], p['wm2'], p['bm2'], jnp.tanh)

    D = jax.vmap(jnp.diag)(d)
    D_inv = jnp.linalg.inv(D) + 1e-6
    D_in_sqr = jnp.sqrt(D_inv)
    u_r = u[..., None]
    U = u_r @ jnp.swapaxes(u_r, -2, -1)
    ut_d_inv_u = jnp.swapaxes(u_r, -2, -1) @ (D_inv @ u_r)
    eta = 1.0 / (1.0 + ut_d_inv_u)
    right = (1.0 - jnp.sqrt(eta)) / ut_d_inv_u
    R = D_in_sqr - right * (D_inv @ (U @ D_in_sqr))
    z = (R @ v[..., None])[..., 0] + mean
    return mean, R, z


if __name__ == "__main__":
    key = jax.random.PRNGKey(0)
    B, IN, L = 8, 4, 8
    keys = jax.random.split(key, 16)

    def init(k, fan_in, fan_out):
        return jax.random.uniform(k, (fan_in, fan_out), jnp.float32,
                                  -1.0, 1.0) / jnp.sqrt(jnp.float32(fan_in))

    params = {
        'wd1': init(keys[0], IN, L), 'bd1': init(keys[1], 1, L),
        'wd2': init(keys[2], L, L),  'bd2': init(keys[3], 1, L),
        'wu1': init(keys[4], IN, L), 'bu1': init(keys[5], 1, L),
        'wu2': init(keys[6], L, L),  'bu2': init(keys[7], 1, L),
        'wm1': init(keys[8], IN, L), 'bm1': init(keys[9], 1, L),
        'wm2': init(keys[10], L, L), 'bm2': init(keys[11], 1, L),
    }
    x = jax.random.normal(keys[12], (B, IN), jnp.float32)
    # deterministic stand-in for torch.randn(mean.size()) inside calculate_z
    v = jax.random.normal(keys[13], (B, L), jnp.float32)

    with jax.default_matmul_precision('highest'):
        mean, R, z = layer_forward(x, v, params)
        jax.block_until_ready((mean, R, z))
        mean_r, R_r, z_r = layer_ref(x, v, params)

    np.testing.assert_allclose(np.asarray(mean), np.asarray(mean_r), rtol=1e-4, atol=1e-5)
    np.testing.assert_allclose(np.asarray(R),    np.asarray(R_r),    rtol=1e-4, atol=1e-5)
    np.testing.assert_allclose(np.asarray(z),    np.asarray(z_r),    rtol=1e-4, atol=1e-5)

    print("KERNEL_OK")
</pallas_src>

<mosaic_0001>
module attributes {stable_mosaic.version = 11 : i64} {
  func.func @layer_kernel(%arg0: memref<8x13xf32, #tpu.memory_space<vmem>>, %arg1: memref<33x24xf32, #tpu.memory_space<vmem>>, %arg2: memref<8x16xf32, #tpu.memory_space<vmem>>, %arg3: memref<8x8x8xf32, #tpu.memory_space<vmem>>) attributes {dimension_semantics = [], scalar_prefetch = 0 : i64, scratch_operands = 0 : i64, tpu.core_type = #tpu.core_type<tc>} {
    %c0 = arith.constant 0 : index
    %c0_0 = arith.constant 0 : index
    %0 = vector.load %arg0[%c0, %c0_0] : memref<8x13xf32, #tpu.memory_space<vmem>>, vector<8x13xf32>
    %c0_1 = arith.constant 0 : index
    %c0_2 = arith.constant 0 : index
    %1 = vector.load %arg1[%c0_1, %c0_2] : memref<33x24xf32, #tpu.memory_space<vmem>>, vector<33x24xf32>
    %2 = vector.extract_strided_slice %0 {offsets = [0, 0], sizes = [8, 5], strides = [1, 1]} : vector<8x13xf32> to vector<8x5xf32>
    %3 = vector.extract_strided_slice %0 {offsets = [0, 5], sizes = [8, 8], strides = [1, 1]} : vector<8x13xf32> to vector<8x8xf32>
    %4 = vector.extract_strided_slice %1 {offsets = [0, 0], sizes = [5, 24], strides = [1, 1]} : vector<33x24xf32> to vector<5x24xf32>
    %5 = vector.extract_strided_slice %1 {offsets = [8, 0], sizes = [24, 24], strides = [1, 1]} : vector<33x24xf32> to vector<24x24xf32>
    %6 = vector.extract_strided_slice %1 {offsets = [32, 0], sizes = [1, 24], strides = [1, 1]} : vector<33x24xf32> to vector<1x24xf32>
    %7 = tpu.iota {dimensions = array<i32: 1>} : vector<8x24xi32>
    %c16_i32 = arith.constant 16 : i32
    %8 = vector.broadcast %c16_i32 : i32 to vector<8x24xi32>
    %9 = arith.cmpi sge, %7, %8 : vector<8x24xi32>
    %cst = arith.constant dense<0.000000e+00> : vector<8x24xf32>
    %10 = tpu.matmul %2, %4, %cst {dimension_numbers = #tpu.dot_dimension_numbers<[1], [0], [0], [1], [0, 0, 1, 1], [], []>, precision = #tpu.contract_precision<fp32>} : vector<8x5xf32>, vector<5x24xf32>, vector<8x24xf32> -> vector<8x24xf32>
    %11 = arith.negf %10 : vector<8x24xf32>
    %12 = math.exp %11 : vector<8x24xf32>
    %cst_3 = arith.constant 1.000000e+00 : f32
    %13 = vector.broadcast %cst_3 : f32 to vector<8x24xf32>
    %14 = arith.addf %13, %12 : vector<8x24xf32>
    %15 = arith.divf %13, %14 : vector<8x24xf32>
    %cst_4 = arith.constant 2.000000e+00 : f32
    %16 = vector.broadcast %cst_4 : f32 to vector<8x24xf32>
    %17 = arith.mulf %16, %15 : vector<8x24xf32>
    %cst_5 = arith.constant 1.000000e+00 : f32
    %18 = vector.broadcast %cst_5 : f32 to vector<8x24xf32>
    %19 = arith.subf %17, %18 : vector<8x24xf32>
    %20 = arith.select %9, %19, %15 : vector<8x24xi1>, vector<8x24xf32>
    %cst_6 = arith.constant dense<0.000000e+00> : vector<8x24xf32>
    %21 = tpu.matmul %20, %5, %cst_6 {dimension_numbers = #tpu.dot_dimension_numbers<[1], [0], [0], [1], [0, 0, 1, 1], [], []>, precision = #tpu.contract_precision<fp32>} : vector<8x24xf32>, vector<24x24xf32>, vector<8x24xf32> -> vector<8x24xf32>
    %22 = vector.broadcast %6 : vector<1x24xf32> to vector<8x24xf32>
    %23 = arith.addf %21, %22 : vector<8x24xf32>
    %24 = arith.negf %23 : vector<8x24xf32>
    %25 = math.exp %24 : vector<8x24xf32>
    %cst_7 = arith.constant 1.000000e+00 : f32
    %26 = vector.broadcast %cst_7 : f32 to vector<8x24xf32>
    %27 = arith.addf %26, %25 : vector<8x24xf32>
    %28 = arith.divf %26, %27 : vector<8x24xf32>
    %cst_8 = arith.constant 2.000000e+00 : f32
    %29 = vector.broadcast %cst_8 : f32 to vector<8x24xf32>
    %30 = arith.mulf %29, %28 : vector<8x24xf32>
    %cst_9 = arith.constant 1.000000e+00 : f32
    %31 = vector.broadcast %cst_9 : f32 to vector<8x24xf32>
    %32 = arith.subf %30, %31 : vector<8x24xf32>
    %33 = arith.select %9, %32, %28 : vector<8x24xi1>, vector<8x24xf32>
    %34 = vector.extract_strided_slice %33 {offsets = [0, 0], sizes = [8, 8], strides = [1, 1]} : vector<8x24xf32> to vector<8x8xf32>
    %35 = vector.extract_strided_slice %33 {offsets = [0, 8], sizes = [8, 8], strides = [1, 1]} : vector<8x24xf32> to vector<8x8xf32>
    %36 = vector.extract_strided_slice %33 {offsets = [0, 16], sizes = [8, 8], strides = [1, 1]} : vector<8x24xf32> to vector<8x8xf32>
    %cst_10 = arith.constant 1.000000e+00 : f32
    %37 = vector.broadcast %cst_10 : f32 to vector<8x8xf32>
    %38 = arith.divf %37, %34 : vector<8x8xf32>
    %cst_11 = arith.constant 9.99999997E-7 : f32
    %39 = vector.broadcast %cst_11 : f32 to vector<8x8xf32>
    %40 = arith.addf %38, %39 : vector<8x8xf32>
    %41 = math.sqrt %40 : vector<8x8xf32>
    %cst_12 = arith.constant dense<0.000000e+00> : vector<8xf32>
    %42 = vector.multi_reduction <add>, %35, %cst_12 [1] : vector<8x8xf32> to vector<8xf32>
    %43 = vector.shape_cast %42 : vector<8xf32> to vector<8x1xf32>
    %44 = arith.mulf %35, %38 : vector<8x8xf32>
    %cst_13 = arith.constant 9.99999997E-7 : f32
    %45 = vector.broadcast %cst_13 : f32 to vector<8x1xf32>
    %46 = arith.mulf %45, %43 : vector<8x1xf32>
    %47 = vector.broadcast %46 : vector<8x1xf32> to vector<8x8xf32>
    %48 = arith.addf %44, %47 : vector<8x8xf32>
    %49 = arith.mulf %41, %35 : vector<8x8xf32>
    %50 = vector.broadcast %43 : vector<8x1xf32> to vector<8x8xf32>
    %51 = arith.subf %50, %35 : vector<8x8xf32>
    %cst_14 = arith.constant 1.000000e-03 : f32
    %52 = vector.broadcast %cst_14 : f32 to vector<8x8xf32>
    %53 = arith.mulf %52, %51 : vector<8x8xf32>
    %54 = arith.addf %49, %53 : vector<8x8xf32>
    %55 = arith.mulf %35, %48 : vector<8x8xf32>
    %cst_15 = arith.constant dense<0.000000e+00> : vector<8xf32>
    %56 = vector.multi_reduction <add>, %55, %cst_15 [1] : vector<8x8xf32> to vector<8xf32>
    %57 = vector.shape_cast %56 : vector<8xf32> to vector<8x1xf32>
    %cst_16 = arith.constant 1.000000e+00 : f32
    %58 = vector.broadcast %cst_16 : f32 to vector<8x1xf32>
    %59 = arith.addf %58, %57 : vector<8x1xf32>
    %60 = math.rsqrt %59 : vector<8x1xf32>
    %61 = arith.mulf %60, %60 : vector<8x1xf32>
    %cst_17 = arith.constant 1.000000e+00 : f32
    %62 = vector.broadcast %cst_17 : f32 to vector<8x1xf32>
    %63 = arith.addf %62, %60 : vector<8x1xf32>
    %64 = arith.divf %61, %63 : vector<8x1xf32>
    %65 = tpu.iota {dimensions = array<i32: 0>} : vector<8x8xi32>
    %66 = tpu.iota {dimensions = array<i32: 1>} : vector<8x8xi32>
    %67 = arith.cmpi eq, %65, %66 : vector<8x8xi32>
    %68 = vector.shape_cast %67 : vector<8x8xi1> to vector<1x8x8xi1>
    %69 = vector.shape_cast %41 : vector<8x8xf32> to vector<8x8x1xf32>
    %cst_18 = arith.constant 1.000000e-03 : f32
    %70 = vector.shape_cast %68 : vector<1x8x8xi1> to vector<1x8x8xi1>
    %71 = vector.broadcast %70 : vector<1x8x8xi1> to vector<8x8x8xi1>
    %72 = vector.shape_cast %69 : vector<8x8x1xf32> to vector<8x8x1xf32>
    %73 = vector.broadcast %72 : vector<8x8x1xf32> to vector<8x8x8xf32>
    %74 = vector.broadcast %cst_18 : f32 to vector<8x8x8xf32>
    %75 = arith.select %71, %73, %74 : vector<8x8x8xi1>, vector<8x8x8xf32>
    %76 = vector.shape_cast %64 : vector<8x1xf32> to vector<8x1x1xf32>
    %77 = vector.shape_cast %48 : vector<8x8xf32> to vector<8x8x1xf32>
    %78 = vector.broadcast %76 : vector<8x1x1xf32> to vector<8x8x1xf32>
    %79 = arith.mulf %78, %77 : vector<8x8x1xf32>
    %80 = vector.shape_cast %54 : vector<8x8xf32> to vector<8x1x8xf32>
    %81 = vector.broadcast %79 : vector<8x8x1xf32> to vector<8x8x8xf32>
    %82 = vector.broadcast %80 : vector<8x1x8xf32> to vector<8x8x8xf32>
    %83 = arith.mulf %81, %82 : vector<8x8x8xf32>
    %84 = arith.subf %75, %83 : vector<8x8x8xf32>
    %cst_19 = arith.constant dense<0.000000e+00> : vector<8xf32>
    %85 = vector.multi_reduction <add>, %3, %cst_19 [1] : vector<8x8xf32> to vector<8xf32>
    %86 = vector.shape_cast %85 : vector<8xf32> to vector<8x1xf32>
    %87 = arith.mulf %54, %3 : vector<8x8xf32>
    %cst_20 = arith.constant dense<0.000000e+00> : vector<8xf32>
    %88 = vector.multi_reduction <add>, %87, %cst_20 [1] : vector<8x8xf32> to vector<8xf32>
    %89 = vector.shape_cast %88 : vector<8xf32> to vector<8x1xf32>
    %90 = arith.mulf %41, %3 : vector<8x8xf32>
    %91 = vector.broadcast %86 : vector<8x1xf32> to vector<8x8xf32>
    %92 = arith.subf %91, %3 : vector<8x8xf32>
    %cst_21 = arith.constant 1.000000e-03 : f32
    %93 = vector.broadcast %cst_21 : f32 to vector<8x8xf32>
    %94 = arith.mulf %93, %92 : vector<8x8xf32>
    %95 = arith.addf %90, %94 : vector<8x8xf32>
    %96 = arith.mulf %64, %89 : vector<8x1xf32>
    %97 = vector.broadcast %96 : vector<8x1xf32> to vector<8x8xf32>
    %98 = arith.mulf %97, %48 : vector<8x8xf32>
    %99 = arith.subf %95, %98 : vector<8x8xf32>
    %100 = arith.addf %99, %36 : vector<8x8xf32>
    %101 = tpu.concatenate %36, %100 in 1 : vector<8x8xf32>, vector<8x8xf32> -> vector<8x16xf32>
    %c0_22 = arith.constant 0 : index
    %c0_23 = arith.constant 0 : index
    %102 = vector.load %arg2[%c0_22, %c0_23] : memref<8x16xf32, #tpu.memory_space<vmem>>, vector<8x16xf32>
    tpu.vector_store %arg2[%c0_22, %c0_23], %101 {strides = array<i32>} : memref<8x16xf32, #tpu.memory_space<vmem>>, vector<8x16xf32>,
    %c0_24 = arith.constant 0 : index
    %c0_25 = arith.constant 0 : index
    %c0_26 = arith.constant 0 : index
    %103 = vector.load %arg3[%c0_24, %c0_25, %c0_26] : memref<8x8x8xf32, #tpu.memory_space<vmem>>, vector<8x8x8xf32>
    tpu.vector_store %arg3[%c0_24, %c0_25, %c0_26], %84 {strides = array<i32>} : memref<8x8x8xf32, #tpu.memory_space<vmem>>, vector<8x8x8xf32>,
    return
  }
}

</mosaic_0001>

<llo_original>
// kernel: tpu_custom_call.1
$region0: #{tpu_custom_call.1}
  #allocation0 [shape = 'u32[]', space=smem, size = 0x4, offset = 0x4, fixed_abs, tag = 'smem constant byte address 0x4 - core index']
  #allocation1 [shape = 'u32[144,128]{1,0:T(1,128)}', space=vmem, size = 0x12000, scoped, tag = 'internal scratch']
  %s0 = inlined_call_operand.vmem [shape: f32[8,13], index: 0, kind: input, shape index: {}]
  %s1 = inlined_call_operand.vmem [shape: f32[33,24], index: 1, kind: input, shape index: {}]
  %s2 = inlined_call_operand.hbm [shape: f32[8,16], index: 2, kind: output, shape index: {0}]
  %s3 = inlined_call_operand.hbm [shape: f32[8,8,8], index: 3, kind: output, shape index: {1}]
  %4 = xla_tuple %s2, %s3
  %s5 = sld [smem:[#allocation0]]
  $region26: #{tpu_custom_call.1} parent=0
    _
  %s7 = ssub.s32 1, %s5
  %s8 = scalar_select 0, %s7, %s5
  $region1: #{tpu_custom_call.1} parent=0
    #allocation2 [shape = 'u8[4096]{0}', space=vmem, size = 0x1000, scoped, tag = 'output window, operand 0, single buffered']
    #allocation3 [shape = 's32[1]{0}', space=sflag, size = 0x4, scoped, tag = 'scoped memory for tpu_custom_call.1']
    #allocation4 [shape = 'u8[32768]{0}', space=vmem, size = 0x8000, scoped, tag = 'output window, operand 1, single buffered']
    #allocation5 [shape = 's32[1]{0}', space=sflag, size = 0x4, scoped, tag = 'scoped memory for tpu_custom_call.1']
    %9 = vsyncpa [#allocation3], 0
    %10 = vsyncpa [#allocation5], 0
    // Predicated region
    $region2: #{tpu_custom_call.1} parent=1 // pred_check
      _
    $region3: #{tpu_custom_call.1} parent=1 // pred_check_branch
      %12 = sbr.rel (0) target = $region5
    $region4: #{tpu_custom_call.1} parent=1 // pred_region
      _
    $region5: #{tpu_custom_call.1} parent=1 // pred_fallthru
      _
    // Predicated region
    $region6: #{tpu_custom_call.1} parent=1 // pred_check
      _
    $region7: #{tpu_custom_call.1} parent=1 // pred_check_branch
      %14 = sbr.rel (0) target = $region9
    $region8: #{tpu_custom_call.1} parent=1 // pred_region
      _
    $region9: #{tpu_custom_call.1} parent=1 // pred_fallthru
      _
    %v15 = vld [vmem:[%s0] sm:$0xff]
    %v16 = vld [vmem:[%s1] sm:$0xff]
    %v17 = vld [vmem:[%s1 + $0x8] sm:$0xff]
    %v18 = vld [vmem:[%s1 + $0x10] sm:$0xff]
    %v19 = vld [vmem:[%s1 + $0x18] sm:$0xff]
    %v20 = vld [vmem:[%s1 + $0x20] sm:$0x1]
    %v21 = vlaneseq
    %v22 = vand.u32 %v21, 127
    %vm23 = vcmp.ge.s32.totalorder %v22, 16
    %vm24 = vcmask 39936
    %v26 = vsel %vm24, %v15, 0
    %vm28 = vcmask 1044480
    %v30 = vsel %vm28, %v16, 0
    %32 = vmatprep.subr.mxu0 0.0
    %v33 = vand.u32 %v30, 4294901760
    %34 = vmatpush1.msra.mxu0 %v33
    %35 = vmatprep.subr.mxu0 0.0
    %36 = vmatpush1.msra.mxu0 0.0
    %37 = vmatprep.subr.mxu0 0.0
    %38 = vmatpush1.msra.mxu0 0.0
    %39 = vmatprep.subr.mxu0 0.0
    %40 = vmatpush1.msra.mxu0 0.0
    %41 = vmatprep.subr.mxu0 0.0
    %42 = vmatpush1.msra.mxu0 0.0
    %43 = vmatprep.subr.mxu0 0.0
    %44 = vmatpush1.msra.mxu0 0.0
    %45 = vmatprep.subr.mxu0 0.0
    %46 = vmatpush1.msra.mxu0 0.0
    %47 = vmatprep.subr.mxu0 0.0
    %48 = vmatpush1.msra.mxu0 0.0
    %49 = vmatprep.subr.mxu0 0.0
    %50 = vmatpush1.msra.mxu0 0.0
    %51 = vmatprep.subr.mxu0 0.0
    %52 = vmatpush1.msra.mxu0 0.0
    %53 = vmatprep.subr.mxu0 0.0
    %54 = vmatpush1.msra.mxu0 0.0
    %55 = vmatprep.subr.mxu0 0.0
    %56 = vmatpush1.msra.mxu0 0.0
    %57 = vmatprep.subr.mxu0 0.0
    %58 = vmatpush1.msra.mxu0 0.0
    %59 = vmatprep.subr.mxu0 0.0
    %60 = vmatpush1.msra.mxu0 0.0
    %61 = vmatprep.subr.mxu0 0.0
    %62 = vmatpush1.msra.mxu0 0.0
    %63 = vmatprep.subr.mxu0 0.0
    %64 = vmatpush1.msra.mxu0 0.0
    %65 = vmatprep.subr.mxu0 0.0
    %66 = vmatpush1.msra.mxu0 0.0
    %67 = vmatprep.subr.mxu0 0.0
    %68 = vmatpush1.msra.mxu0 0.0
    %69 = vmatprep.subr.mxu0 0.0
    %70 = vmatpush1.msra.mxu0 0.0
    %71 = vmatprep.subr.mxu0 0.0
    %72 = vmatpush1.msra.mxu0 0.0
    %73 = vmatprep.subr.mxu0 0.0
    %74 = vmatpush1.msra.mxu0 0.0
    %75 = vmatprep.subr.mxu0 0.0
    %76 = vmatpush1.msra.mxu0 0.0
    %77 = vmatprep.subr.mxu0 0.0
    %78 = vmatpush1.msra.mxu0 0.0
    %79 = vmatprep.subr.mxu0 0.0
    %80 = vmatpush1.msra.mxu0 0.0
    %81 = vmatprep.subr.mxu0 0.0
    %82 = vmatpush1.msra.mxu0 0.0
    %83 = vmatprep.subr.mxu0 0.0
    %84 = vmatpush1.msra.mxu0 0.0
    %85 = vmatprep.subr.mxu0 0.0
    %86 = vmatpush1.msra.mxu0 0.0
    %87 = vmatprep.subr.mxu0 0.0
    %88 = vmatpush1.msra.mxu0 0.0
    %89 = vmatprep.subr.mxu0 0.0
    %90 = vmatpush1.msra.mxu0 0.0
    %91 = vmatprep.subr.mxu0 0.0
    %92 = vmatpush1.msra.mxu0 0.0
    %93 = vmatprep.subr.mxu0 0.0
    %94 = vmatpush1.msra.mxu0 0.0
    %95 = vmatprep.subr.mxu0 0.0
    %96 = vmatpush1.msra.mxu0 0.0
    %97 = vmatprep.mubr.f32.mxu0 0.0
    %v98 = vand.u32 %v26, 4294901760
    %v99 = vsub.f32 %v26, %v98
    %v100 = vand.u32 %v99, 4294901760
    %v101 = vsub.f32 %v99, %v100
    %v102 = vand.u32 %v101, 4294901760
    %103 = vmatmul.mubr.f32.gmra.mrb[0].mxu0 %v102
    %v104 = vpop.f32.mrb[0].mxu0
    %v105 = vadd.f32 0.0, %v104
    %v106 = vpop.f32.mrb[0].mxu0
    %107 = vdwg.mxu0
    %108 = vmatprep.subr.mxu0 0.0
    %v109 = vand.u32 %v30, 4294901760
    %v110 = vsub.f32 %v30, %v109
    %v111 = vand.u32 %v110, 4294901760
    %v112 = vsub.f32 %v110, %v111
    %v113 = vand.u32 %v112, 4294901760
    %114 = vmatpush1.msra.mxu0 %v113
    %115 = vmatprep.subr.mxu0 0.0
    %116 = vmatpush1.msra.mxu0 0.0
    %117 = vmatprep.subr.mxu0 0.0
    %118 = vmatpush1.msra.mxu0 0.0
    %119 = vmatprep.subr.mxu0 0.0
    %120 = vmatpush1.msra.mxu0 0.0
    %121 = vmatprep.subr.mxu0 0.0
    %122 = vmatpush1.msra.mxu0 0.0
    %123 = vmatprep.subr.mxu0 0.0
    %124 = vmatpush1.msra.mxu0 0.0
    %125 = vmatprep.subr.mxu0 0.0
    %126 = vmatpush1.msra.mxu0 0.0
    %127 = vmatprep.subr.mxu0 0.0
    %128 = vmatpush1.msra.mxu0 0.0
    %129 = vmatprep.subr.mxu0 0.0
    %130 = vmatpush1.msra.mxu0 0.0
    %131 = vmatprep.subr.mxu0 0.0
    %132 = vmatpush1.msra.mxu0 0.0
    %133 = vmatprep.subr.mxu0 0.0
    %134 = vmatpush1.msra.mxu0 0.0
    %135 = vmatprep.subr.mxu0 0.0
    %136 = vmatpush1.msra.mxu0 0.0
    %137 = vmatprep.subr.mxu0 0.0
    %138 = vmatpush1.msra.mxu0 0.0
    %139 = vmatprep.subr.mxu0 0.0
    %140 = vmatpush1.msra.mxu0 0.0
    %141 = vmatprep.subr.mxu0 0.0
    %142 = vmatpush1.msra.mxu0 0.0
    %143 = vmatprep.subr.mxu0 0.0
    %144 = vmatpush1.msra.mxu0 0.0
    %145 = vmatprep.subr.mxu0 0.0
    %146 = vmatpush1.msra.mxu0 0.0
    %147 = vmatprep.subr.mxu0 0.0
    %148 = vmatpush1.msra.mxu0 0.0
    %149 = vmatprep.subr.mxu0 0.0
    %150 = vmatpush1.msra.mxu0 0.0
    %151 = vmatprep.subr.mxu0 0.0
    %152 = vmatpush1.msra.mxu0 0.0
    %153 = vmatprep.subr.mxu0 0.0
    %154 = vmatpush1.msra.mxu0 0.0
    %155 = vmatprep.subr.mxu0 0.0
    %156 = vmatpush1.msra.mxu0 0.0
    %157 = vmatprep.subr.mxu0 0.0
    %158 = vmatpush1.msra.mxu0 0.0
    %159 = vmatprep.subr.mxu0 0.0
    %160 = vmatpush1.msra.mxu0 0.0
    %161 = vmatprep.subr.mxu0 0.0
    %162 = vmatpush1.msra.mxu0 0.0
    %163 = vmatprep.subr.mxu0 0.0
    %164 = vmatpush1.msra.mxu0 0.0
    %165 = vmatprep.subr.mxu0 0.0
    %166 = vmatpush1.msra.mxu0 0.0
    %167 = vmatprep.subr.mxu0 0.0
    %168 = vmatpush1.msra.mxu0 0.0
    %169 = vmatprep.subr.mxu0 0.0
    %170 = vmatpush1.msra.mxu0 0.0
    %171 = vmatprep.subr.mxu0 0.0
    %172 = vmatpush1.msra.mxu0 0.0
    %173 = vmatprep.subr.mxu0 0.0
    %174 = vmatpush1.msra.mxu0 0.0
    %175 = vmatprep.subr.mxu0 0.0
    %176 = vmatpush1.msra.mxu0 0.0
    %177 = vmatprep.mubr.f32.mxu0 0.0
    %v178 = vand.u32 %v26, 4294901760
    %179 = vmatmul.mubr.f32.gmra.mrb[0].mxu0 %v178
    %v180 = vpop.f32.mrb[0].mxu0
    %v181 = vadd.f32 %v105, %v180
    %v182 = vpop.f32.mrb[0].mxu0
    %183 = vdwg.mxu0
    %184 = vmatprep.subr.mxu0 0.0
    %v185 = vand.u32 %v30, 4294901760
    %v186 = vsub.f32 %v30, %v185
    %187 = vmatpush1.msra.mxu0 %v186
    %188 = vmatprep.subr.mxu0 0.0
    %189 = vmatpush1.msra.mxu0 0.0
    %190 = vmatprep.subr.mxu0 0.0
    %191 = vmatpush1.msra.mxu0 0.0
    %192 = vmatprep.subr.mxu0 0.0
    %193 = vmatpush1.msra.mxu0 0.0
    %194 = vmatprep.subr.mxu0 0.0
    %195 = vmatpush1.msra.mxu0 0.0
    %196 = vmatprep.subr.mxu0 0.0
    %197 = vmatpush1.msra.mxu0 0.0
    %198 = vmatprep.subr.mxu0 0.0
    %199 = vmatpush1.msra.mxu0 0.0
    %200 = vmatprep.subr.mxu0 0.0
    %201 = vmatpush1.msra.mxu0 0.0
    %202 = vmatprep.subr.mxu0 0.0
    %203 = vmatpush1.msra.mxu0 0.0
    %204 = vmatprep.subr.mxu0 0.0
    %205 = vmatpush1.msra.mxu0 0.0
    %206 = vmatprep.subr.mxu0 0.0
    %207 = vmatpush1.msra.mxu0 0.0
    %208 = vmatprep.subr.mxu0 0.0
    %209 = vmatpush1.msra.mxu0 0.0
    %210 = vmatprep.subr.mxu0 0.0
    %211 = vmatpush1.msra.mxu0 0.0
    %212 = vmatprep.subr.mxu0 0.0
    %213 = vmatpush1.msra.mxu0 0.0
    %214 = vmatprep.subr.mxu0 0.0
    %215 = vmatpush1.msra.mxu0 0.0
    %216 = vmatprep.subr.mxu0 0.0
    %217 = vmatpush1.msra.mxu0 0.0
    %218 = vmatprep.subr.mxu0 0.0
    %219 = vmatpush1.msra.mxu0 0.0
    %220 = vmatprep.subr.mxu0 0.0
    %221 = vmatpush1.msra.mxu0 0.0
    %222 = vmatprep.subr.mxu0 0.0
    %223 = vmatpush1.msra.mxu0 0.0
    %224 = vmatprep.subr.mxu0 0.0
    %225 = vmatpush1.msra.mxu0 0.0
    %226 = vmatprep.subr.mxu0 0.0
    %227 = vmatpush1.msra.mxu0 0.0
    %228 = vmatprep.subr.mxu0 0.0
    %229 = vmatpush1.msra.mxu0 0.0
    %230 = vmatprep.subr.mxu0 0.0
    %231 = vmatpush1.msra.mxu0 0.0
    %232 = vmatprep.subr.mxu0 0.0
    %233 = vmatpush1.msra.mxu0 0.0
    %234 = vmatprep.subr.mxu0 0.0
    %235 = vmatpush1.msra.mxu0 0.0
    %236 = vmatprep.subr.mxu0 0.0
    %237 = vmatpush1.msra.mxu0 0.0
    %238 = vmatprep.subr.mxu0 0.0
    %239 = vmatpush1.msra.mxu0 0.0
    %240 = vmatprep.subr.mxu0 0.0
    %241 = vmatpush1.msra.mxu0 0.0
    %242 = vmatprep.subr.mxu0 0.0
    %243 = vmatpush1.msra.mxu0 0.0
    %244 = vmatprep.subr.mxu0 0.0
    %245 = vmatpush1.msra.mxu0 0.0
    %246 = vmatprep.subr.mxu0 0.0
    %247 = vmatpush1.msra.mxu0 0.0
    %248 = vmatprep.subr.mxu0 0.0
    %249 = vmatpush1.msra.mxu0 0.0
    %250 = vmatprep.mubr.f32.mxu0 0.0
    %v251 = vand.u32 %v26, 4294901760
    %v252 = vsub.f32 %v26, %v251
    %253 = vmatmul.mubr.f32.gmra.mrb[0].mxu0 %v252
    %v254 = vpop.f32.mrb[0].mxu0
    %v255 = vadd.f32 %v181, %v254
    %v256 = vpop.f32.mrb[0].mxu0
    %257 = vdwg.mxu0
    %258 = vmatprep.subr.mxu0 0.0
    %v259 = vand.u32 %v30, 4294901760
    %260 = vmatpush1.msra.mxu0 %v259
    %261 = vmatprep.subr.mxu0 0.0
    %262 = vmatpush1.msra.mxu0 0.0
    %263 = vmatprep.subr.mxu0 0.0
    %264 = vmatpush1.msra.mxu0 0.0
    %265 = vmatprep.subr.mxu0 0.0
    %266 = vmatpush1.msra.mxu0 0.0
    %267 = vmatprep.subr.mxu0 0.0
    %268 = vmatpush1.msra.mxu0 0.0
    %269 = vmatprep.subr.mxu0 0.0
    %270 = vmatpush1.msra.mxu0 0.0
    %271 = vmatprep.subr.mxu0 0.0
    %272 = vmatpush1.msra.mxu0 0.0
    %273 = vmatprep.subr.mxu0 0.0
    %274 = vmatpush1.msra.mxu0 0.0
    %275 = vmatprep.subr.mxu0 0.0
    %276 = vmatpush1.msra.mxu0 0.0
    %277 = vmatprep.subr.mxu0 0.0
    %278 = vmatpush1.msra.mxu0 0.0
    %279 = vmatprep.subr.mxu0 0.0
    %280 = vmatpush1.msra.mxu0 0.0
    %281 = vmatprep.subr.mxu0 0.0
    %282 = vmatpush1.msra.mxu0 0.0
    %283 = vmatprep.subr.mxu0 0.0
    %284 = vmatpush1.msra.mxu0 0.0
    %285 = vmatprep.subr.mxu0 0.0
    %286 = vmatpush1.msra.mxu0 0.0
    %287 = vmatprep.subr.mxu0 0.0
    %288 = vmatpush1.msra.mxu0 0.0
    %289 = vmatprep.subr.mxu0 0.0
    %290 = vmatpush1.msra.mxu0 0.0
    %291 = vmatprep.subr.mxu0 0.0
    %292 = vmatpush1.msra.mxu0 0.0
    %293 = vmatprep.subr.mxu0 0.0
    %294 = vmatpush1.msra.mxu0 0.0
    %295 = vmatprep.subr.mxu0 0.0
    %296 = vmatpush1.msra.mxu0 0.0
    %297 = vmatprep.subr.mxu0 0.0
    %298 = vmatpush1.msra.mxu0 0.0
    %299 = vmatprep.subr.mxu0 0.0
    %300 = vmatpush1.msra.mxu0 0.0
    %301 = vmatprep.subr.mxu0 0.0
    %302 = vmatpush1.msra.mxu0 0.0
    %303 = vmatprep.subr.mxu0 0.0
    %304 = vmatpush1.msra.mxu0 0.0
    %305 = vmatprep.subr.mxu0 0.0
    %306 = vmatpush1.msra.mxu0 0.0
    %307 = vmatprep.subr.mxu0 0.0
    %308 = vmatpush1.msra.mxu0 0.0
    %309 = vmatprep.subr.mxu0 0.0
    %310 = vmatpush1.msra.mxu0 0.0
    %311 = vmatprep.subr.mxu0 0.0
    %312 = vmatpush1.msra.mxu0 0.0
    %313 = vmatprep.subr.mxu0 0.0
    %314 = vmatpush1.msra.mxu0 0.0
    %315 = vmatprep.subr.mxu0 0.0
    %316 = vmatpush1.msra.mxu0 0.0
    %317 = vmatprep.subr.mxu0 0.0
    %318 = vmatpush1.msra.mxu0 0.0
    %319 = vmatprep.subr.mxu0 0.0
    %320 = vmatpush1.msra.mxu0 0.0
    %321 = vmatprep.subr.mxu0 0.0
    %322 = vmatpush1.msra.mxu0 0.0
    %323 = vmatprep.mubr.f32.mxu0 0.0
    %v324 = vand.u32 %v26, 4294901760
    %v325 = vsub.f32 %v26, %v324
    %v326 = vand.u32 %v325, 4294901760
    %327 = vmatmul.mubr.f32.gmra.mrb[0].mxu0 %v326
    %v328 = vpop.f32.mrb[0].mxu0
    %v329 = vadd.f32 %v255, %v328
    %v330 = vpop.f32.mrb[0].mxu0
    %331 = vdwg.mxu0
    %332 = vmatprep.subr.mxu0 0.0
    %v333 = vand.u32 %v30, 4294901760
    %v334 = vsub.f32 %v30, %v333
    %v335 = vand.u32 %v334, 4294901760
    %336 = vmatpush1.msra.mxu0 %v335
    %337 = vmatprep.subr.mxu0 0.0
    %338 = vmatpush1.msra.mxu0 0.0
    %339 = vmatprep.subr.mxu0 0.0
    %340 = vmatpush1.msra.mxu0 0.0
    %341 = vmatprep.subr.mxu0 0.0
    %342 = vmatpush1.msra.mxu0 0.0
    %343 = vmatprep.subr.mxu0 0.0
    %344 = vmatpush1.msra.mxu0 0.0
    %345 = vmatprep.subr.mxu0 0.0
    %346 = vmatpush1.msra.mxu0 0.0
    %347 = vmatprep.subr.mxu0 0.0
    %348 = vmatpush1.msra.mxu0 0.0
    %349 = vmatprep.subr.mxu0 0.0
    %350 = vmatpush1.msra.mxu0 0.0
    %351 = vmatprep.subr.mxu0 0.0
    %352 = vmatpush1.msra.mxu0 0.0
    %353 = vmatprep.subr.mxu0 0.0
    %354 = vmatpush1.msra.mxu0 0.0
    %355 = vmatprep.subr.mxu0 0.0
    %356 = vmatpush1.msra.mxu0 0.0
    %357 = vmatprep.subr.mxu0 0.0
    %358 = vmatpush1.msra.mxu0 0.0
    %359 = vmatprep.subr.mxu0 0.0
    %360 = vmatpush1.msra.mxu0 0.0
    %361 = vmatprep.subr.mxu0 0.0
    %362 = vmatpush1.msra.mxu0 0.0
    %363 = vmatprep.subr.mxu0 0.0
    %364 = vmatpush1.msra.mxu0 0.0
    %365 = vmatprep.subr.mxu0 0.0
    %366 = vmatpush1.msra.mxu0 0.0
    %367 = vmatprep.subr.mxu0 0.0
    %368 = vmatpush1.msra.mxu0 0.0
    %369 = vmatprep.subr.mxu0 0.0
    %370 = vmatpush1.msra.mxu0 0.0
    %371 = vmatprep.subr.mxu0 0.0
    %372 = vmatpush1.msra.mxu0 0.0
    %373 = vmatprep.subr.mxu0 0.0
    %374 = vmatpush1.msra.mxu0 0.0
    %375 = vmatprep.subr.mxu0 0.0
    %376 = vmatpush1.msra.mxu0 0.0
    %377 = vmatprep.subr.mxu0 0.0
    %378 = vmatpush1.msra.mxu0 0.0
    %379 = vmatprep.subr.mxu0 0.0
    %380 = vmatpush1.msra.mxu0 0.0
    %381 = vmatprep.subr.mxu0 0.0
    %382 = vmatpush1.msra.mxu0 0.0
    %383 = vmatprep.subr.mxu0 0.0
    %384 = vmatpush1.msra.mxu0 0.0
    %385 = vmatprep.subr.mxu0 0.0
    %386 = vmatpush1.msra.mxu0 0.0
    %387 = vmatprep.subr.mxu0 0.0
    %388 = vmatpush1.msra.mxu0 0.0
    %389 = vmatprep.subr.mxu0 0.0
    %390 = vmatpush1.msra.mxu0 0.0
    %391 = vmatprep.subr.mxu0 0.0
    %392 = vmatpush1.msra.mxu0 0.0
    %393 = vmatprep.subr.mxu0 0.0
    %394 = vmatpush1.msra.mxu0 0.0
    %395 = vmatprep.subr.mxu0 0.0
    %396 = vmatpush1.msra.mxu0 0.0
    %397 = vmatprep.subr.mxu0 0.0
    %398 = vmatpush1.msra.mxu0 0.0
    %399 = vmatprep.mubr.f32.mxu0 0.0
    %v400 = vand.u32 %v26, 4294901760
    %401 = vmatmul.mubr.f32.gmra.mrb[0].mxu0 %v400
    %v402 = vpop.f32.mrb[0].mxu0
    %v403 = vadd.f32 %v329, %v402
    %v404 = vpop.f32.mrb[0].mxu0
    %405 = vdwg.mxu0
    %406 = vmatprep.subr.mxu0 0.0
    %v407 = vand.u32 %v30, 4294901760
    %408 = vmatpush1.msra.mxu0 %v407
    %409 = vmatprep.subr.mxu0 0.0
    %410 = vmatpush1.msra.mxu0 0.0
    %411 = vmatprep.subr.mxu0 0.0
    %412 = vmatpush1.msra.mxu0 0.0
    %413 = vmatprep.subr.mxu0 0.0
    %414 = vmatpush1.msra.mxu0 0.0
    %415 = vmatprep.subr.mxu0 0.0
    %416 = vmatpush1.msra.mxu0 0.0
    %417 = vmatprep.subr.mxu0 0.0
    %418 = vmatpush1.msra.mxu0 0.0
    %419 = vmatprep.subr.mxu0 0.0
    %420 = vmatpush1.msra.mxu0 0.0
    %421 = vmatprep.subr.mxu0 0.0
    %422 = vmatpush1.msra.mxu0 0.0
    %423 = vmatprep.subr.mxu0 0.0
    %424 = vmatpush1.msra.mxu0 0.0
    %425 = vmatprep.subr.mxu0 0.0
    %426 = vmatpush1.msra.mxu0 0.0
    %427 = vmatprep.subr.mxu0 0.0
    %428 = vmatpush1.msra.mxu0 0.0
    %429 = vmatprep.subr.mxu0 0.0
    %430 = vmatpush1.msra.mxu0 0.0
    %431 = vmatprep.subr.mxu0 0.0
    %432 = vmatpush1.msra.mxu0 0.0
    %433 = vmatprep.subr.mxu0 0.0
    %434 = vmatpush1.msra.mxu0 0.0
    %435 = vmatprep.subr.mxu0 0.0
    %436 = vmatpush1.msra.mxu0 0.0
    %437 = vmatprep.subr.mxu0 0.0
    %438 = vmatpush1.msra.mxu0 0.0
    %439 = vmatprep.subr.mxu0 0.0
    %440 = vmatpush1.msra.mxu0 0.0
    %441 = vmatprep.subr.mxu0 0.0
    %442 = vmatpush1.msra.mxu0 0.0
    %443 = vmatprep.subr.mxu0 0.0
    %444 = vmatpush1.msra.mxu0 0.0
    %445 = vmatprep.subr.mxu0 0.0
    %446 = vmatpush1.msra.mxu0 0.0
    %447 = vmatprep.subr.mxu0 0.0
    %448 = vmatpush1.msra.mxu0 0.0
    %449 = vmatprep.subr.mxu0 0.0
    %450 = vmatpush1.msra.mxu0 0.0
    %451 = vmatprep.subr.mxu0 0.0
    %452 = vmatpush1.msra.mxu0 0.0
    %453 = vmatprep.subr.mxu0 0.0
    %454 = vmatpush1.msra.mxu0 0.0
    %455 = vmatprep.subr.mxu0 0.0
    %456 = vmatpush1.msra.mxu0 0.0
    %457 = vmatprep.subr.mxu0 0.0
    %458 = vmatpush1.msra.mxu0 0.0
    %459 = vmatprep.subr.mxu0 0.0
    %460 = vmatpush1.msra.mxu0 0.0
    %461 = vmatprep.subr.mxu0 0.0
    %462 = vmatpush1.msra.mxu0 0.0
    %463 = vmatprep.subr.mxu0 0.0
    %464 = vmatpush1.msra.mxu0 0.0
    %465 = vmatprep.subr.mxu0 0.0
    %466 = vmatpush1.msra.mxu0 0.0
    %467 = vmatprep.subr.mxu0 0.0
    %468 = vmatpush1.msra.mxu0 0.0
    %469 = vmatprep.subr.mxu0 0.0
    %470 = vmatpush1.msra.mxu0 0.0
    %471 = vmatprep.mubr.f32.mxu0 0.0
    %v472 = vand.u32 %v26, 4294901760
    %473 = vmatmul.mubr.f32.gmra.mrb[0].mxu0 %v472
    %v474 = vpop.f32.mrb[0].mxu0
    %v475 = vadd.f32 %v403, %v474
    %v476 = vpop.f32.mrb[0].mxu0
    %477 = vdwg.mxu0
    %v478 = vxor.u32 %v475, 2147483648
    %v479 = vmul.f32 %v478, 1.442695
    %v480 = vpow.pop %v479
    %v481 = vadd.f32 %v480, 1.0
    %v482 = vrcp.pop %v481
    %v483 = vmul.f32 1.0, %v482
    %v484 = vmul.f32 %v483, 2.0
    %v485 = vsub.f32 %v484, 1.0
    %v486 = vsel %vm23, %v485, %v483
    %v487 = vlaneseq
    %v488 = vshrl.u32 %v487, 7
    %v489 = vsub.s32 0, %v488
    %v490 = vrot.slane %v20, %v489
    %vm491 = vcmask 195584
    %v493 = vsel %vm491, %v486, 0
    %495 = vmatprep.subr.mxu0 0.0
    %v496 = vand.u32 %v17, 4294901760
    %497 = vmatpush1.msra.mxu0 %v496
    %498 = vmatprep.subr.mxu0 0.0
    %v499 = vand.u32 %v18, 4294901760
    %500 = vmatpush1.msra.mxu0 %v499
    %501 = vmatprep.subr.mxu0 0.0
    %v502 = vand.u32 %v19, 4294901760
    %503 = vmatpush1.msra.mxu0 %v502
    %504 = vmatprep.subr.mxu0 0.0
    %505 = vmatpush1.msra.mxu0 0.0
    %506 = vmatprep.subr.mxu0 0.0
    %507 = vmatpush1.msra.mxu0 0.0
    %508 = vmatprep.subr.mxu0 0.0
    %509 = vmatpush1.msra.mxu0 0.0
    %510 = vmatprep.subr.mxu0 0.0
    %511 = vmatpush1.msra.mxu0 0.0
    %512 = vmatprep.subr.mxu0 0.0
    %513 = vmatpush1.msra.mxu0 0.0
    %514 = vmatprep.subr.mxu0 0.0
    %515 = vmatpush1.msra.mxu0 0.0
    %516 = vmatprep.subr.mxu0 0.0
    %517 = vmatpush1.msra.mxu0 0.0
    %518 = vmatprep.subr.mxu0 0.0
    %519 = vmatpush1.msra.mxu0 0.0
    %520 = vmatprep.subr.mxu0 0.0
    %521 = vmatpush1.msra.mxu0 0.0
    %522 = vmatprep.subr.mxu0 0.0
    %523 = vmatpush1.msra.mxu0 0.0
    %524 = vmatprep.subr.mxu0 0.0
    %525 = vmatpush1.msra.mxu0 0.0
    %526 = vmatprep.subr.mxu0 0.0
    %527 = vmatpush1.msra.mxu0 0.0
    %528 = vmatprep.subr.mxu0 0.0
    %529 = vmatpush1.msra.mxu0 0.0
    %530 = vmatprep.subr.mxu0 0.0
    %531 = vmatpush1.msra.mxu0 0.0
    %532 = vmatprep.subr.mxu0 0.0
    %533 = vmatpush1.msra.mxu0 0.0
    %534 = vmatprep.subr.mxu0 0.0
    %535 = vmatpush1.msra.mxu0 0.0
    %536 = vmatprep.subr.mxu0 0.0
    %537 = vmatpush1.msra.mxu0 0.0
    %538 = vmatprep.subr.mxu0 0.0
    %539 = vmatpush1.msra.mxu0 0.0
    %540 = vmatprep.subr.mxu0 0.0
    %541 = vmatpush1.msra.mxu0 0.0
    %542 = vmatprep.subr.mxu0 0.0
    %543 = vmatpush1.msra.mxu0 0.0
    %544 = vmatprep.subr.mxu0 0.0
    %545 = vmatpush1.msra.mxu0 0.0
    %546 = vmatprep.subr.mxu0 0.0
    %547 = vmatpush1.msra.mxu0 0.0
    %548 = vmatprep.subr.mxu0 0.0
    %549 = vmatpush1.msra.mxu0 0.0
    %550 = vmatprep.subr.mxu0 0.0
    %551 = vmatpush1.msra.mxu0 0.0
    %552 = vmatprep.subr.mxu0 0.0
    %553 = vmatpush1.msra.mxu0 0.0
    %554 = vmatprep.subr.mxu0 0.0
    %555 = vmatpush1.msra.mxu0 0.0
    %556 = vmatprep.subr.mxu0 0.0
    %557 = vmatpush1.msra.mxu0 0.0
    %558 = vmatprep.subr.mxu0 0.0
    %559 = vmatpush1.msra.mxu0 0.0
    %560 = vmatprep.subr.mxu0 0.0
    %561 = vmatpush1.msra.mxu0 0.0
    %562 = vmatprep.mubr.f32.mxu0 0.0
    %v563 = vand.u32 %v493, 4294901760
    %v564 = vsub.f32 %v493, %v563
    %v565 = vand.u32 %v564, 4294901760
    %v566 = vsub.f32 %v564, %v565
    %v567 = vand.u32 %v566, 4294901760
    %568 = vmatmul.mubr.f32.gmra.mrb[0].mxu0 %v567
    %v569 = vpop.f32.mrb[0].mxu0
    %v570 = vadd.f32 %v490, %v569
    %v571 = vpop.f32.mrb[0].mxu0
    %572 = vdwg.mxu0
    %573 = vmatprep.subr.mxu0 0.0
    %v574 = vand.u32 %v17, 4294901760
    %v575 = vsub.f32 %v17, %v574
    %v576 = vand.u32 %v575, 4294901760
    %v577 = vsub.f32 %v575, %v576
    %v578 = vand.u32 %v577, 4294901760
    %579 = vmatpush1.msra.mxu0 %v578
    %580 = vmatprep.subr.mxu0 0.0
    %v581 = vand.u32 %v18, 4294901760
    %v582 = vsub.f32 %v18, %v581
    %v583 = vand.u32 %v582, 4294901760
    %v584 = vsub.f32 %v582, %v583
    %v585 = vand.u32 %v584, 4294901760
    %586 = vmatpush1.msra.mxu0 %v585
    %587 = vmatprep.subr.mxu0 0.0
    %v588 = vand.u32 %v19, 4294901760
    %v589 = vsub.f32 %v19, %v588
    %v590 = vand.u32 %v589, 4294901760
    %v591 = vsub.f32 %v589, %v590
    %v592 = vand.u32 %v591, 4294901760
    %593 = vmatpush1.msra.mxu0 %v592
    %594 = vmatprep.subr.mxu0 0.0
    %595 = vmatpush1.msra.mxu0 0.0
    %596 = vmatprep.subr.mxu0 0.0
    %597 = vmatpush1.msra.mxu0 0.0
    %598 = vmatprep.subr.mxu0 0.0
    %599 = vmatpush1.msra.mxu0 0.0
    %600 = vmatprep.subr.mxu0 0.0
    %601 = vmatpush1.msra.mxu0 0.0
    %602 = vmatprep.subr.mxu0 0.0
    %603 = vmatpush1.msra.mxu0 0.0
    %604 = vmatprep.subr.mxu0 0.0
    %605 = vmatpush1.msra.mxu0 0.0
    %606 = vmatprep.subr.mxu0 0.0
    %607 = vmatpush1.msra.mxu0 0.0
    %608 = vmatprep.subr.mxu0 0.0
    %609 = vmatpush1.msra.mxu0 0.0
    %610 = vmatprep.subr.mxu0 0.0
    %611 = vmatpush1.msra.mxu0 0.0
    %612 = vmatprep.subr.mxu0 0.0
    %613 = vmatpush1.msra.mxu0 0.0
    %614 = vmatprep.subr.mxu0 0.0
    %615 = vmatpush1.msra.mxu0 0.0
    %616 = vmatprep.subr.mxu0 0.0
    %617 = vmatpush1.msra.mxu0 0.0
    %618 = vmatprep.subr.mxu0 0.0
    %619 = vmatpush1.msra.mxu0 0.0
    %620 = vmatprep.subr.mxu0 0.0
    %621 = vmatpush1.msra.mxu0 0.0
    %622 = vmatprep.subr.mxu0 0.0
    %623 = vmatpush1.msra.mxu0 0.0
    %624 = vmatprep.subr.mxu0 0.0
    %625 = vmatpush1.msra.mxu0 0.0
    %626 = vmatprep.subr.mxu0 0.0
    %627 = vmatpush1.msra.mxu0 0.0
    %628 = vmatprep.subr.mxu0 0.0
    %629 = vmatpush1.msra.mxu0 0.0
    %630 = vmatprep.subr.mxu0 0.0
    %631 = vmatpush1.msra.mxu0 0.0
    %632 = vmatprep.subr.mxu0 0.0
    %633 = vmatpush1.msra.mxu0 0.0
    %634 = vmatprep.subr.mxu0 0.0
    %635 = vmatpush1.msra.mxu0 0.0
    %636 = vmatprep.subr.mxu0 0.0
    %637 = vmatpush1.msra.mxu0 0.0
    %638 = vmatprep.subr.mxu0 0.0
    %639 = vmatpush1.msra.mxu0 0.0
    %640 = vmatprep.subr.mxu0 0.0
    %641 = vmatpush1.msra.mxu0 0.0
    %642 = vmatprep.subr.mxu0 0.0
    %643 = vmatpush1.msra.mxu0 0.0
    %644 = vmatprep.subr.mxu0 0.0
    %645 = vmatpush1.msra.mxu0 0.0
    %646 = vmatprep.subr.mxu0 0.0
    %647 = vmatpush1.msra.mxu0 0.0
    %648 = vmatprep.subr.mxu0 0.0
    %649 = vmatpush1.msra.mxu0 0.0
    %650 = vmatprep.subr.mxu0 0.0
    %651 = vmatpush1.msra.mxu0 0.0
    %652 = vmatprep.mubr.f32.mxu0 0.0
    %v653 = vand.u32 %v493, 4294901760
    %654 = vmatmul.mubr.f32.gmra.mrb[0].mxu0 %v653
    %v655 = vpop.f32.mrb[0].mxu0
    %v656 = vadd.f32 %v570, %v655
    %v657 = vpop.f32.mrb[0].mxu0
    %658 = vdwg.mxu0
    %659 = vmatprep.subr.mxu0 0.0
    %v660 = vand.u32 %v17, 4294901760
    %v661 = vsub.f32 %v17, %v660
    %662 = vmatpush1.msra.mxu0 %v661
    %663 = vmatprep.subr.mxu0 0.0
    %v664 = vand.u32 %v18, 4294901760
    %v665 = vsub.f32 %v18, %v664
    %666 = vmatpush1.msra.mxu0 %v665
    %667 = vmatprep.subr.mxu0 0.0
    %v668 = vand.u32 %v19, 4294901760
    %v669 = vsub.f32 %v19, %v668
    %670 = vmatpush1.msra.mxu0 %v669
    %671 = vmatprep.subr.mxu0 0.0
    %672 = vmatpush1.msra.mxu0 0.0
    %673 = vmatprep.subr.mxu0 0.0
    %674 = vmatpush1.msra.mxu0 0.0
    %675 = vmatprep.subr.mxu0 0.0
    %676 = vmatpush1.msra.mxu0 0.0
    %677 = vmatprep.subr.mxu0 0.0
    %678 = vmatpush1.msra.mxu0 0.0
    %679 = vmatprep.subr.mxu0 0.0
    %680 = vmatpush1.msra.mxu0 0.0
    %681 = vmatprep.subr.mxu0 0.0
    %682 = vmatpush1.msra.mxu0 0.0
    %683 = vmatprep.subr.mxu0 0.0
    %684 = vmatpush1.msra.mxu0 0.0
    %685 = vmatprep.subr.mxu0 0.0
    %686 = vmatpush1.msra.mxu0 0.0
    %687 = vmatprep.subr.mxu0 0.0
    %688 = vmatpush1.msra.mxu0 0.0
    %689 = vmatprep.subr.mxu0 0.0
    %690 = vmatpush1.msra.mxu0 0.0
    %691 = vmatprep.subr.mxu0 0.0
    %692 = vmatpush1.msra.mxu0 0.0
    %693 = vmatprep.subr.mxu0 0.0
    %694 = vmatpush1.msra.mxu0 0.0
    %695 = vmatprep.subr.mxu0 0.0
    %696 = vmatpush1.msra.mxu0 0.0
    %697 = vmatprep.subr.mxu0 0.0
    %698 = vmatpush1.msra.mxu0 0.0
    %699 = vmatprep.subr.mxu0 0.0
    %700 = vmatpush1.msra.mxu0 0.0
    %701 = vmatprep.subr.mxu0 0.0
    %702 = vmatpush1.msra.mxu0 0.0
    %703 = vmatprep.subr.mxu0 0.0
    %704 = vmatpush1.msra.mxu0 0.0
    %705 = vmatprep.subr.mxu0 0.0
    %706 = vmatpush1.msra.mxu0 0.0
    %707 = vmatprep.subr.mxu0 0.0
    %708 = vmatpush1.msra.mxu0 0.0
    %709 = vmatprep.subr.mxu0 0.0
    %710 = vmatpush1.msra.mxu0 0.0
    %711 = vmatprep.subr.mxu0 0.0
    %712 = vmatpush1.msra.mxu0 0.0
    %713 = vmatprep.subr.mxu0 0.0
    %714 = vmatpush1.msra.mxu0 0.0
    %715 = vmatprep.subr.mxu0 0.0
    %716 = vmatpush1.msra.mxu0 0.0
    %717 = vmatprep.subr.mxu0 0.0
    %718 = vmatpush1.msra.mxu0 0.0
    %719 = vmatprep.subr.mxu0 0.0
    %720 = vmatpush1.msra.mxu0 0.0
    %721 = vmatprep.subr.mxu0 0.0
    %722 = vmatpush1.msra.mxu0 0.0
    %723 = vmatprep.subr.mxu0 0.0
    %724 = vmatpush1.msra.mxu0 0.0
    %725 = vmatprep.subr.mxu0 0.0
    %726 = vmatpush1.msra.mxu0 0.0
    %727 = vmatprep.subr.mxu0 0.0
    %728 = vmatpush1.msra.mxu0 0.0
    %729 = vmatprep.mubr.f32.mxu0 0.0
    %v730 = vand.u32 %v493, 4294901760
    %v731 = vsub.f32 %v493, %v730
    %732 = vmatmul.mubr.f32.gmra.mrb[0].mxu0 %v731
    %v733 = vpop.f32.mrb[0].mxu0
    %v734 = vadd.f32 %v656, %v733
    %v735 = vpop.f32.mrb[0].mxu0
    %736 = vdwg.mxu0
    %737 = vmatprep.subr.mxu0 0.0
    %v738 = vand.u32 %v17, 4294901760
    %739 = vmatpush1.msra.mxu0 %v738
    %740 = vmatprep.subr.mxu0 0.0
    %v741 = vand.u32 %v18, 4294901760
    %742 = vmatpush1.msra.mxu0 %v741
    %743 = vmatprep.subr.mxu0 0.0
    %v744 = vand.u32 %v19, 4294901760
    %745 = vmatpush1.msra.mxu0 %v744
    %746 = vmatprep.subr.mxu0 0.0
    %747 = vmatpush1.msra.mxu0 0.0
    %748 = vmatprep.subr.mxu0 0.0
    %749 = vmatpush1.msra.mxu0 0.0
    %750 = vmatprep.subr.mxu0 0.0
    %751 = vmatpush1.msra.mxu0 0.0
    %752 = vmatprep.subr.mxu0 0.0
    %753 = vmatpush1.msra.mxu0 0.0
    %754 = vmatprep.subr.mxu0 0.0
    %755 = vmatpush1.msra.mxu0 0.0
    %756 = vmatprep.subr.mxu0 0.0
    %757 = vmatpush1.msra.mxu0 0.0
    %758 = vmatprep.subr.mxu0 0.0
    %759 = vmatpush1.msra.mxu0 0.0
    %760 = vmatprep.subr.mxu0 0.0
    %761 = vmatpush1.msra.mxu0 0.0
    %762 = vmatprep.subr.mxu0 0.0
    %763 = vmatpush1.msra.mxu0 0.0
    %764 = vmatprep.subr.mxu0 0.0
    %765 = vmatpush1.msra.mxu0 0.0
    %766 = vmatprep.subr.mxu0 0.0
    %767 = vmatpush1.msra.mxu0 0.0
    %768 = vmatprep.subr.mxu0 0.0
    %769 = vmatpush1.msra.mxu0 0.0
    %770 = vmatprep.subr.mxu0 0.0
    %771 = vmatpush1.msra.mxu0 0.0
    %772 = vmatprep.subr.mxu0 0.0
    %773 = vmatpush1.msra.mxu0 0.0
    %774 = vmatprep.subr.mxu0 0.0
    %775 = vmatpush1.msra.mxu0 0.0
    %776 = vmatprep.subr.mxu0 0.0
    %777 = vmatpush1.msra.mxu0 0.0
    %778 = vmatprep.subr.mxu0 0.0
    %779 = vmatpush1.msra.mxu0 0.0
    %780 = vmatprep.subr.mxu0 0.0
    %781 = vmatpush1.msra.mxu0 0.0
    %782 = vmatprep.subr.mxu0 0.0
    %783 = vmatpush1.msra.mxu0 0.0
    %784 = vmatprep.subr.mxu0 0.0
    %785 = vmatpush1.msra.mxu0 0.0
    %786 = vmatprep.subr.mxu0 0.0
    %787 = vmatpush1.msra.mxu0 0.0
    %788 = vmatprep.subr.mxu0 0.0
    %789 = vmatpush1.msra.mxu0 0.0
    %790 = vmatprep.subr.mxu0 0.0
    %791 = vmatpush1.msra.mxu0 0.0
    %792 = vmatprep.subr.mxu0 0.0
    %793 = vmatpush1.msra.mxu0 0.0
    %794 = vmatprep.subr.mxu0 0.0
    %795 = vmatpush1.msra.mxu0 0.0
    %796 = vmatprep.subr.mxu0 0.0
    %797 = vmatpush1.msra.mxu0 0.0
    %798 = vmatprep.subr.mxu0 0.0
    %799 = vmatpush1.msra.mxu0 0.0
    %800 = vmatprep.subr.mxu0 0.0
    %801 = vmatpush1.msra.mxu0 0.0
    %802 = vmatprep.subr.mxu0 0.0
    %803 = vmatpush1.msra.mxu0 0.0
    %804 = vmatprep.mubr.f32.mxu0 0.0
    %v805 = vand.u32 %v493, 4294901760
    %v806 = vsub.f32 %v493, %v805
    %v807 = vand.u32 %v806, 4294901760
    %808 = vmatmul.mubr.f32.gmra.mrb[0].mxu0 %v807
    %v809 = vpop.f32.mrb[0].mxu0
    %v810 = vadd.f32 %v734, %v809
    %v811 = vpop.f32.mrb[0].mxu0
    %812 = vdwg.mxu0
    %813 = vmatprep.subr.mxu0 0.0
    %v814 = vand.u32 %v17, 4294901760
    %v815 = vsub.f32 %v17, %v814
    %v816 = vand.u32 %v815, 4294901760
    %817 = vmatpush1.msra.mxu0 %v816
    %818 = vmatprep.subr.mxu0 0.0
    %v819 = vand.u32 %v18, 4294901760
    %v820 = vsub.f32 %v18, %v819
    %v821 = vand.u32 %v820, 4294901760
    %822 = vmatpush1.msra.mxu0 %v821
    %823 = vmatprep.subr.mxu0 0.0
    %v824 = vand.u32 %v19, 4294901760
    %v825 = vsub.f32 %v19, %v824
    %v826 = vand.u32 %v825, 4294901760
    %827 = vmatpush1.msra.mxu0 %v826
    %828 = vmatprep.subr.mxu0 0.0
    %829 = vmatpush1.msra.mxu0 0.0
    %830 = vmatprep.subr.mxu0 0.0
    %831 = vmatpush1.msra.mxu0 0.0
    %832 = vmatprep.subr.mxu0 0.0
    %833 = vmatpush1.msra.mxu0 0.0
    %834 = vmatprep.subr.mxu0 0.0
    %835 = vmatpush1.msra.mxu0 0.0
    %836 = vmatprep.subr.mxu0 0.0
    %837 = vmatpush1.msra.mxu0 0.0
    %838 = vmatprep.subr.mxu0 0.0
    %839 = vmatpush1.msra.mxu0 0.0
    %840 = vmatprep.subr.mxu0 0.0
    %841 = vmatpush1.msra.mxu0 0.0
    %842 = vmatprep.subr.mxu0 0.0
    %843 = vmatpush1.msra.mxu0 0.0
    %844 = vmatprep.subr.mxu0 0.0
    %845 = vmatpush1.msra.mxu0 0.0
    %846 = vmatprep.subr.mxu0 0.0
    %847 = vmatpush1.msra.mxu0 0.0
    %848 = vmatprep.subr.mxu0 0.0
    %849 = vmatpush1.msra.mxu0 0.0
    %850 = vmatprep.subr.mxu0 0.0
    %851 = vmatpush1.msra.mxu0 0.0
    %852 = vmatprep.subr.mxu0 0.0
    %853 = vmatpush1.msra.mxu0 0.0
    %854 = vmatprep.subr.mxu0 0.0
    %855 = vmatpush1.msra.mxu0 0.0
    %856 = vmatprep.subr.mxu0 0.0
    %857 = vmatpush1.msra.mxu0 0.0
    %858 = vmatprep.subr.mxu0 0.0
    %859 = vmatpush1.msra.mxu0 0.0
    %860 = vmatprep.subr.mxu0 0.0
    %861 = vmatpush1.msra.mxu0 0.0
    %862 = vmatprep.subr.mxu0 0.0
    %863 = vmatpush1.msra.mxu0 0.0
    %864 = vmatprep.subr.mxu0 0.0
    %865 = vmatpush1.msra.mxu0 0.0
    %866 = vmatprep.subr.mxu0 0.0
    %867 = vmatpush1.msra.mxu0 0.0
    %868 = vmatprep.subr.mxu0 0.0
    %869 = vmatpush1.msra.mxu0 0.0
    %870 = vmatprep.subr.mxu0 0.0
    %871 = vmatpush1.msra.mxu0 0.0
    %872 = vmatprep.subr.mxu0 0.0
    %873 = vmatpush1.msra.mxu0 0.0
    %874 = vmatprep.subr.mxu0 0.0
    %875 = vmatpush1.msra.mxu0 0.0
    %876 = vmatprep.subr.mxu0 0.0
    %877 = vmatpush1.msra.mxu0 0.0
    %878 = vmatprep.subr.mxu0 0.0
    %879 = vmatpush1.msra.mxu0 0.0
    %880 = vmatprep.subr.mxu0 0.0
    %881 = vmatpush1.msra.mxu0 0.0
    %882 = vmatprep.subr.mxu0 0.0
    %883 = vmatpush1.msra.mxu0 0.0
    %884 = vmatprep.subr.mxu0 0.0
    %885 = vmatpush1.msra.mxu0 0.0
    %886 = vmatprep.mubr.f32.mxu0 0.0
    %v887 = vand.u32 %v493, 4294901760
    %888 = vmatmul.mubr.f32.gmra.mrb[0].mxu0 %v887
    %v889 = vpop.f32.mrb[0].mxu0
    %v890 = vadd.f32 %v810, %v889
    %v891 = vpop.f32.mrb[0].mxu0
    %892 = vdwg.mxu0
    %893 = vmatprep.subr.mxu0 0.0
    %v894 = vand.u32 %v17, 4294901760
    %895 = vmatpush1.msra.mxu0 %v894
    %896 = vmatprep.subr.mxu0 0.0
    %v897 = vand.u32 %v18, 4294901760
    %898 = vmatpush1.msra.mxu0 %v897
    %899 = vmatprep.subr.mxu0 0.0
    %v900 = vand.u32 %v19, 4294901760
    %901 = vmatpush1.msra.mxu0 %v900
    %902 = vmatprep.subr.mxu0 0.0
    %903 = vmatpush1.msra.mxu0 0.0
    %904 = vmatprep.subr.mxu0 0.0
    %905 = vmatpush1.msra.mxu0 0.0
    %906 = vmatprep.subr.mxu0 0.0
    %907 = vmatpush1.msra.mxu0 0.0
    %908 = vmatprep.subr.mxu0 0.0
    %909 = vmatpush1.msra.mxu0 0.0
    %910 = vmatprep.subr.mxu0 0.0
    %911 = vmatpush1.msra.mxu0 0.0
    %912 = vmatprep.subr.mxu0 0.0
    %913 = vmatpush1.msra.mxu0 0.0
    %914 = vmatprep.subr.mxu0 0.0
    %915 = vmatpush1.msra.mxu0 0.0
    %916 = vmatprep.subr.mxu0 0.0
    %917 = vmatpush1.msra.mxu0 0.0
    %918 = vmatprep.subr.mxu0 0.0
    %919 = vmatpush1.msra.mxu0 0.0
    %920 = vmatprep.subr.mxu0 0.0
    %921 = vmatpush1.msra.mxu0 0.0
    %922 = vmatprep.subr.mxu0 0.0
    %923 = vmatpush1.msra.mxu0 0.0
    %924 = vmatprep.subr.mxu0 0.0
    %925 = vmatpush1.msra.mxu0 0.0
    %926 = vmatprep.subr.mxu0 0.0
    %927 = vmatpush1.msra.mxu0 0.0
    %928 = vmatprep.subr.mxu0 0.0
    %929 = vmatpush1.msra.mxu0 0.0
    %930 = vmatprep.subr.mxu0 0.0
    %931 = vmatpush1.msra.mxu0 0.0
    %932 = vmatprep.subr.mxu0 0.0
    %933 = vmatpush1.msra.mxu0 0.0
    %934 = vmatprep.subr.mxu0 0.0
    %935 = vmatpush1.msra.mxu0 0.0
    %936 = vmatprep.subr.mxu0 0.0
    %937 = vmatpush1.msra.mxu0 0.0
    %938 = vmatprep.subr.mxu0 0.0
    %939 = vmatpush1.msra.mxu0 0.0
    %940 = vmatprep.subr.mxu0 0.0
    %941 = vmatpush1.msra.mxu0 0.0
    %942 = vmatprep.subr.mxu0 0.0
    %943 = vmatpush1.msra.mxu0 0.0
    %944 = vmatprep.subr.mxu0 0.0
    %945 = vmatpush1.msra.mxu0 0.0
    %946 = vmatprep.subr.mxu0 0.0
    %947 = vmatpush1.msra.mxu0 0.0
    %948 = vmatprep.subr.mxu0 0.0
    %949 = vmatpush1.msra.mxu0 0.0
    %950 = vmatprep.subr.mxu0 0.0
    %951 = vmatpush1.msra.mxu0 0.0
    %952 = vmatprep.subr.mxu0 0.0
    %953 = vmatpush1.msra.mxu0 0.0
    %954 = vmatprep.subr.mxu0 0.0
    %955 = vmatpush1.msra.mxu0 0.0
    %956 = vmatprep.subr.mxu0 0.0
    %957 = vmatpush1.msra.mxu0 0.0
    %958 = vmatprep.subr.mxu0 0.0
    %959 = vmatpush1.msra.mxu0 0.0
    %960 = vmatprep.mubr.f32.mxu0 0.0
    %v961 = vand.u32 %v493, 4294901760
    %962 = vmatmul.mubr.f32.gmra.mrb[0].mxu0 %v961
    %v963 = vpop.f32.mrb[0].mxu0
    %v964 = vadd.f32 %v890, %v963
    %v965 = vpop.f32.mrb[0].mxu0
    %966 = vdwg.mxu0
    %v967 = vxor.u32 %v964, 2147483648
    %v968 = vmul.f32 %v967, 1.442695
    %v969 = vpow.pop %v968
    %v970 = vadd.f32 %v969, 1.0
    %v971 = vrcp.pop %v970
    %v972 = vmul.f32 1.0, %v971
    %v973 = vmul.f32 %v972, 2.0
    %v974 = vsub.f32 %v973, 1.0
    %v975 = vsel %vm23, %v974, %v972
    %v976 = vrcp.pop %v975
    %v977 = vmul.f32 1.0, %v976
    %v978 = vadd.f32 %v977, 1e-06
    %v979 = vrsqrt.pop %v978
    %v980 = vmul.f32 %v978, %v979
    %vm981 = vcmp.eq.f32.partialorder %v978, inf
    %v982 = vsel %vm981, %v978, %v980
    %vm983 = vcmp.eq.f32.partialorder %v978, 0.0
    %v984 = vand.u32 %v978, 2147483648
    %v985 = vsel %vm983, %v984, %v982
    %987 = vrot.lane.b32.xlu0 %v975, 120
    %v988 = vpop.permute.xlu0 %987
    %vm990 = vcmask 64512
    %v991 = vsel %vm990, %v988, 0.0
    %992 = vadd.xlane.f32.xlu0 %v991
    %v993 = vpop.xlane.xlu0 %992
    %995 = vrot.lane.b32.xlu0 %v977, 8
    %v996 = vpop.permute.xlu0 %995
    %v998 = vmul.f32 %v975, %v996
    %v999 = vmul.f32 %v993, 1e-06
    %v1000 = vadd.f32 %v998, %v999
    %v1001 = vmul.f32 %v985, %v988
    %v1002 = vsub.f32 %v993, %v975
    %v1003 = vmul.f32 %v1002, 0.001
    %1005 = vrot.lane.b32.xlu0 %v1003, 120
    %v1006 = vpop.permute.xlu0 %1005
    %v1008 = vadd.f32 %v1001, %v1006
    %v1009 = vmul.f32 %v975, %v1000
    %1011 = vrot.lane.b32.xlu0 %v1009, 120
    %v1012 = vpop.permute.xlu0 %1011
    %v1014 = vsel %vm990, %v1012, 0.0
    %1015 = vadd.xlane.f32.xlu0 %v1014
    %v1016 = vpop.xlane.xlu0 %1015
    %v1017 = vadd.f32 %v1016, 1.0
    %v1018 = vrsqrt.pop %v1017
    %v1019 = vmul.f32 %v1018, %v1018
    %v1020 = vadd.f32 %v1018, 1.0
    %v1021 = vrcp.pop %v1020
    %v1022 = vmul.f32 %v1019, %v1021
    %v1023 = vlaneseq
    %v1024 = vshrl.u32 %v1023, 7
    %vm1025 = vcmp.eq.s32.totalorder %v1024, %v22
    %v1026 = vlaneseq
    %v1027 = vshrl.u32 %v1026, 7
    %v1028 = vsub.s32 0, %v1027
    %v1029 = vrot.slane %v985, %v1028
    %1031 = vbcast.lane.b32.xlu0 %v1029, 256
    %v1032 = vpop.permute.xlu0 %1031
    %v1033 = vlaneseq
    %v1034 = vshrl.u32 %v1033, 7
    %v1035 = vsub.s32 1, %v1034
    %v1036 = vrot.slane %v985, %v1035
    %1038 = vbcast.lane.b32.xlu0 %v1036, 256
    %v1039 = vpop.permute.xlu0 %1038
    %v1040 = vlaneseq
    %v1041 = vshrl.u32 %v1040, 7
    %v1042 = vsub.s32 2, %v1041
    %v1043 = vrot.slane %v985, %v1042
    %1045 = vbcast.lane.b32.xlu0 %v1043, 256
    %v1046 = vpop.permute.xlu0 %1045
    %v1047 = vlaneseq
    %v1048 = vshrl.u32 %v1047, 7
    %v1049 = vsub.s32 3, %v1048
    %v1050 = vrot.slane %v985, %v1049
    %1052 = vbcast.lane.b32.xlu0 %v1050, 256
    %v1053 = vpop.permute.xlu0 %1052
    %v1054 = vlaneseq
    %v1055 = vshrl.u32 %v1054, 7
    %v1056 = vsub.s32 4, %v1055
    %v1057 = vrot.slane %v985, %v1056
    %1059 = vbcast.lane.b32.xlu0 %v1057, 256
    %v1060 = vpop.permute.xlu0 %1059
    %v1061 = vlaneseq
    %v1062 = vshrl.u32 %v1061, 7
    %v1063 = vsub.s32 5, %v1062
    %v1064 = vrot.slane %v985, %v1063
    %1066 = vbcast.lane.b32.xlu0 %v1064, 256
    %v1067 = vpop.permute.xlu0 %1066
    %v1068 = vlaneseq
    %v1069 = vshrl.u32 %v1068, 7
    %v1070 = vsub.s32 6, %v1069
    %v1071 = vrot.slane %v985, %v1070
    %1073 = vbcast.lane.b32.xlu0 %v1071, 256
    %v1074 = vpop.permute.xlu0 %1073
    %v1075 = vlaneseq
    %v1076 = vshrl.u32 %v1075, 7
    %v1077 = vsub.s32 7, %v1076
    %v1078 = vrot.slane %v985, %v1077
    %1080 = vbcast.lane.b32.xlu0 %v1078, 256
    %v1081 = vpop.permute.xlu0 %1080
    %v1082 = vsel %vm1025, 1, 0
    %vm1083 = vcmp.eq.s32.totalorder %v1082, 1
    %v1084 = vsel %vm1083, %v1032, 0.001
    %v1085 = vsel %vm1083, %v1039, 0.001
    %v1086 = vsel %vm1083, %v1046, 0.001
    %v1087 = vsel %vm1083, %v1053, 0.001
    %v1088 = vsel %vm1083, %v1060, 0.001
    %v1089 = vsel %vm1083, %v1067, 0.001
    %v1090 = vsel %vm1083, %v1074, 0.001
    %v1091 = vsel %vm1083, %v1081, 0.001
    %v1093 = vlaneseq
    %v1094 = vshrl.u32 %v1093, 7
    %v1095 = vsub.s32 0, %v1094
    %v1096 = vrot.slane %v1022, %v1095
    %v1097 = vlaneseq
    %v1098 = vshrl.u32 %v1097, 7
    %v1099 = vsub.s32 1, %v1098
    %v1100 = vrot.slane %v1022, %v1099
    %v1101 = vlaneseq
    %v1102 = vshrl.u32 %v1101, 7
    %v1103 = vsub.s32 2, %v1102
    %v1104 = vrot.slane %v1022, %v1103
    %v1105 = vlaneseq
    %v1106 = vshrl.u32 %v1105, 7
    %v1107 = vsub.s32 3, %v1106
    %v1108 = vrot.slane %v1022, %v1107
    %v1109 = vlaneseq
    %v1110 = vshrl.u32 %v1109, 7
    %v1111 = vsub.s32 4, %v1110
    %v1112 = vrot.slane %v1022, %v1111
    %v1113 = vlaneseq
    %v1114 = vshrl.u32 %v1113, 7
    %v1115 = vsub.s32 5, %v1114
    %v1116 = vrot.slane %v1022, %v1115
    %v1117 = vlaneseq
    %v1118 = vshrl.u32 %v1117, 7
    %v1119 = vsub.s32 6, %v1118
    %v1120 = vrot.slane %v1022, %v1119
    %v1121 = vlaneseq
    %v1122 = vshrl.u32 %v1121, 7
    %v1123 = vsub.s32 7, %v1122
    %v1124 = vrot.slane %v1022, %v1123
    %v1133 = vlaneseq
    %v1134 = vshrl.u32 %v1133, 7
    %v1135 = vsub.s32 0, %v1134
    %v1136 = vrot.slane %v1000, %v1135
    %s1138 = sor.u32 256, 8
    %1139 = vbcast.lane.b32.xlu0 %v1136, %s1138
    %v1140 = vpop.permute.xlu0 %1139
    %v1141 = vlaneseq
    %v1142 = vshrl.u32 %v1141, 7
    %v1143 = vsub.s32 1, %v1142
    %v1144 = vrot.slane %v1000, %v1143
    %s1146 = sor.u32 256, 8
    %1147 = vbcast.lane.b32.xlu0 %v1144, %s1146
    %v1148 = vpop.permute.xlu0 %1147
    %v1149 = vlaneseq
    %v1150 = vshrl.u32 %v1149, 7
    %v1151 = vsub.s32 2, %v1150
    %v1152 = vrot.slane %v1000, %v1151
    %s1154 = sor.u32 256, 8
    %1155 = vbcast.lane.b32.xlu0 %v1152, %s1154
    %v1156 = vpop.permute.xlu0 %1155
    %v1157 = vlaneseq
    %v1158 = vshrl.u32 %v1157, 7
    %v1159 = vsub.s32 3, %v1158
    %v1160 = vrot.slane %v1000, %v1159
    %s1162 = sor.u32 256, 8
    %1163 = vbcast.lane.b32.xlu0 %v1160, %s1162
    %v1164 = vpop.permute.xlu0 %1163
    %v1165 = vlaneseq
    %v1166 = vshrl.u32 %v1165, 7
    %v1167 = vsub.s32 4, %v1166
    %v1168 = vrot.slane %v1000, %v1167
    %s1170 = sor.u32 256, 8
    %1171 = vbcast.lane.b32.xlu0 %v1168, %s1170
    %v1172 = vpop.permute.xlu0 %1171
    %v1173 = vlaneseq
    %v1174 = vshrl.u32 %v1173, 7
    %v1175 = vsub.s32 5, %v1174
    %v1176 = vrot.slane %v1000, %v1175
    %s1178 = sor.u32 256, 8
    %1179 = vbcast.lane.b32.xlu0 %v1176, %s1178
    %v1180 = vpop.permute.xlu0 %1179
    %v1181 = vlaneseq
    %v1182 = vshrl.u32 %v1181, 7
    %v1183 = vsub.s32 6, %v1182
    %v1184 = vrot.slane %v1000, %v1183
    %s1186 = sor.u32 256, 8
    %1187 = vbcast.lane.b32.xlu0 %v1184, %s1186
    %v1188 = vpop.permute.xlu0 %1187
    %v1189 = vlaneseq
    %v1190 = vshrl.u32 %v1189, 7
    %v1191 = vsub.s32 7, %v1190
    %v1192 = vrot.slane %v1000, %v1191
    %s1194 = sor.u32 256, 8
    %1195 = vbcast.lane.b32.xlu0 %v1192, %s1194
    %v1196 = vpop.permute.xlu0 %1195
    %v1197 = vmul.f32 %v1096, %v1140
    %v1198 = vmul.f32 %v1100, %v1148
    %v1199 = vmul.f32 %v1104, %v1156
    %v1200 = vmul.f32 %v1108, %v1164
    %v1201 = vmul.f32 %v1112, %v1172
    %v1202 = vmul.f32 %v1116, %v1180
    %v1203 = vmul.f32 %v1120, %v1188
    %v1204 = vmul.f32 %v1124, %v1196
    %v1206 = vcombine.high %v1008, %v1008
    %v1208 = vunpack.c.l.s4 1966171168
    %v1209 = vunpack.c.0.s8 %v1208
    %v1210 = vlaneseq
    %v1211 = vshrl.u32 %v1210, 7
    %v1212 = vsub.s32 %v1209, %v1211
    %v1213 = vrot.slane %v1008, %v1212
    %v1215 = vunpack.c.l.s4 1966171168
    %v1216 = vunpack.c.0.s8 %v1215
    %v1217 = vlaneseq
    %v1218 = vshrl.u32 %v1217, 7
    %v1219 = vsub.s32 %v1216, %v1218
    %v1220 = vrot.slane %v1206, %v1219
    %v1221 = vcombine.high %v1213, %v1213
    %v1222 = vcombine.high %v1220, %v1220
    %v1224 = vunpack.c.l.s4 1966171168
    %v1225 = vunpack.c.0.s8 %v1224
    %v1226 = vlaneseq
    %v1227 = vshrl.u32 %v1226, 7
    %v1228 = vsub.s32 %v1225, %v1227
    %v1229 = vrot.slane %v1213, %v1228
    %v1231 = vunpack.c.l.s4 1966171168
    %v1232 = vunpack.c.0.s8 %v1231
    %v1233 = vlaneseq
    %v1234 = vshrl.u32 %v1233, 7
    %v1235 = vsub.s32 %v1232, %v1234
    %v1236 = vrot.slane %v1220, %v1235
    %v1238 = vunpack.c.l.s4 1966171168
    %v1239 = vunpack.c.0.s8 %v1238
    %v1240 = vlaneseq
    %v1241 = vshrl.u32 %v1240, 7
    %v1242 = vsub.s32 %v1239, %v1241
    %v1243 = vrot.slane %v1221, %v1242
    %v1245 = vunpack.c.l.s4 1966171168
    %v1246 = vunpack.c.0.s8 %v1245
    %v1247 = vlaneseq
    %v1248 = vshrl.u32 %v1247, 7
    %v1249 = vsub.s32 %v1246, %v1248
    %v1250 = vrot.slane %v1222, %v1249
    %v1251 = vcombine.high %v1229, %v1229
    %v1252 = vcombine.high %v1236, %v1236
    %v1253 = vcombine.high %v1243, %v1243
    %v1254 = vcombine.high %v1250, %v1250
    %v1255 = vlaneseq
    %v1256 = vshrl.u32 %v1255, 7
    %v1257 = vsub.s32 0, %v1256
    %v1258 = vrot.slane %v1229, %v1257
    %v1259 = vlaneseq
    %v1260 = vshrl.u32 %v1259, 7
    %v1261 = vsub.s32 0, %v1260
    %v1262 = vrot.slane %v1243, %v1261
    %v1263 = vlaneseq
    %v1264 = vshrl.u32 %v1263, 7
    %v1265 = vsub.s32 0, %v1264
    %v1266 = vrot.slane %v1251, %v1265
    %v1267 = vlaneseq
    %v1268 = vshrl.u32 %v1267, 7
    %v1269 = vsub.s32 0, %v1268
    %v1270 = vrot.slane %v1253, %v1269
    %v1271 = vlaneseq
    %v1272 = vshrl.u32 %v1271, 7
    %v1273 = vsub.s32 0, %v1272
    %v1274 = vrot.slane %v1236, %v1273
    %v1275 = vlaneseq
    %v1276 = vshrl.u32 %v1275, 7
    %v1277 = vsub.s32 0, %v1276
    %v1278 = vrot.slane %v1250, %v1277
    %v1279 = vlaneseq
    %v1280 = vshrl.u32 %v1279, 7
    %v1281 = vsub.s32 0, %v1280
    %v1282 = vrot.slane %v1252, %v1281
    %v1283 = vlaneseq
    %v1284 = vshrl.u32 %v1283, 7
    %v1285 = vsub.s32 0, %v1284
    %v1286 = vrot.slane %v1254, %v1285
    %v1295 = vmul.f32 %v1197, %v1258
    %v1296 = vmul.f32 %v1198, %v1262
    %v1297 = vmul.f32 %v1199, %v1266
    %v1298 = vmul.f32 %v1200, %v1270
    %v1299 = vmul.f32 %v1201, %v1274
    %v1300 = vmul.f32 %v1202, %v1278
    %v1301 = vmul.f32 %v1203, %v1282
    %v1302 = vmul.f32 %v1204, %v1286
    %v1303 = vsub.f32 %v1084, %v1295
    %v1304 = vsub.f32 %v1085, %v1296
    %v1305 = vsub.f32 %v1086, %v1297
    %v1306 = vsub.f32 %v1087, %v1298
    %v1307 = vsub.f32 %v1088, %v1299
    %v1308 = vsub.f32 %v1089, %v1300
    %v1309 = vsub.f32 %v1090, %v1301
    %v1310 = vsub.f32 %v1091, %v1302
    %1311 = vrot.lane.b32.xlu0 %v15, 123
    %v1312 = vpop.permute.xlu0 %1311
    %v1314 = vsel %vm990, %v1312, 0.0
    %1315 = vadd.xlane.f32.xlu0 %v1314
    %v1316 = vpop.xlane.xlu0 %1315
    %v1317 = vmul.f32 %v1008, %v1312
    %v1318 = vsel %vm990, %v1317, 0.0
    %1319 = vadd.xlane.f32.xlu0 %v1318
    %v1320 = vpop.xlane.xlu0 %1319
    %v1321 = vmul.f32 %v985, %v1312
    %v1322 = vsub.f32 %v1316, %v15
    %v1323 = vmul.f32 %v1322, 0.001
    %1325 = vrot.lane.b32.xlu0 %v1323, 123
    %v1326 = vpop.permute.xlu0 %1325
    %v1328 = vadd.f32 %v1321, %v1326
    %v1329 = vmul.f32 %v1022, %v1320
    %v1330 = vmul.f32 %v1329, %v1000
    %1332 = vrot.lane.b32.xlu0 %v1330, 120
    %v1333 = vpop.permute.xlu0 %1332
    %v1335 = vsub.f32 %v1328, %v1333
    %1336 = vrot.lane.b32.xlu0 %v975, 112
    %v1337 = vpop.permute.xlu0 %1336
    %v1339 = vadd.f32 %v1335, %v1337
    %1341 = vrot.lane.b32.xlu0 %v1339, 8
    %v1342 = vpop.permute.xlu0 %1341
    %v1344 = vsel %vm990, %v1337, %v1342
    %vm1345 = vcmask 130048
    %1346 = vst.msk [vmem:[#allocation2] sm:$0xff] %vm1345, %v1344
    %1347 = vst.msk [vmem:[#allocation4] sm:$0xff] %vm990, %v1303
    %1348 = vst.msk [vmem:[#allocation4 + $0x8] sm:$0xff] %vm990, %v1304
    %1349 = vst.msk [vmem:[#allocation4 + $0x10] sm:$0xff] %vm990, %v1305
    %1350 = vst.msk [vmem:[#allocation4 + $0x18] sm:$0xff] %vm990, %v1306
    %1351 = vst.msk [vmem:[#allocation4 + $0x20] sm:$0xff] %vm990, %v1307
    %1352 = vst.msk [vmem:[#allocation4 + $0x28] sm:$0xff] %vm990, %v1308
    %1353 = vst.msk [vmem:[#allocation4 + $0x30] sm:$0xff] %vm990, %v1309
    %1354 = vst.msk [vmem:[#allocation4 + $0x38] sm:$0xff] %vm990, %v1310
    // Predicated region
    $region10: #{tpu_custom_call.1} parent=1 // pred_check
      _
    $region11: #{tpu_custom_call.1} parent=1 // pred_check_branch
      %1356 = sbr.rel (0) target = $region13
    $region12: #{tpu_custom_call.1} parent=1 // pred_region
      %s1358 = ssub.s32 128, 128
      %1359 = vsyncadd [#allocation3], %s1358
      %s1361 = sshll.u32 [#allocation2], 4
      %s1362 = int_to_ptr.vmem [resolvable:$true] %s1361
      %1364 = dma.vmem_to_hbm [thread:$0]  %s1362, 128, %s2, [#allocation3]
    $region13: #{tpu_custom_call.1} parent=1 // pred_fallthru
      _
    // Predicated region
    $region14: #{tpu_custom_call.1} parent=1 // pred_check
      _
    $region15: #{tpu_custom_call.1} parent=1 // pred_check_branch
      %1366 = sbr.rel (0) target = $region17
    $region16: #{tpu_custom_call.1} parent=1 // pred_region
      %s1368 = ssub.s32 1024, 1024
      %1369 = vsyncadd [#allocation5], %s1368
      %s1370 = sshll.u32 [#allocation4], 4
      %s1371 = int_to_ptr.vmem [resolvable:$true] %s1370
      %1376 = dma.vmem_to_hbm [thread:$0]  %s1371, 1024, %s3, [#allocation5], 128, 128, 8
    $region17: #{tpu_custom_call.1} parent=1 // pred_fallthru
      _
    // Predicated region
    $region18: #{tpu_custom_call.1} parent=1 // pred_check
      _
    $region19: #{tpu_custom_call.1} parent=1 // pred_check_branch
      %1378 = sbr.rel (0) target = $region21
    $region20: #{tpu_custom_call.1} parent=1 // pred_region
      %1379 = dma.done [#allocation3], 128
    $region21: #{tpu_custom_call.1} parent=1 // pred_fallthru
      _
    // Predicated region
    $region22: #{tpu_custom_call.1} parent=1 // pred_check
      _
    $region23: #{tpu_custom_call.1} parent=1 // pred_check_branch
      %1381 = sbr.rel (0) target = $region25
    $region24: #{tpu_custom_call.1} parent=1 // pred_region
      %1382 = dma.done [#allocation5], 1024
    $region25: #{tpu_custom_call.1} parent=1 // pred_fallthru
      _
    %1383 = vsyncpa [#allocation3], 1
    %1384 = vsyncpa [#allocation5], 1

</llo_original>
